<compile_context>
chip_gen: v7x
topology: tpu7x:2x2x1
jax: 0.10.0
libtpu: 0.0.40
codegen_flags: <defaults>
</compile_context>

<pallas_src>
import numpy as np
import jax
import jax.numpy as jnp
from jax import lax
from jax.experimental import pallas as pl
from jax.experimental.pallas import tpu as pltpu


# ----------------------------------------------------------------------------
# Pallas kernel: fused multi-scale patch-embed (bf16 MXU matmul + f32 bias)
# ----------------------------------------------------------------------------
def _fused_embed_kernel(sid_ref, x_ref, w_ref, b_ref, o_ref):
    # sid_ref: SMEM (num_tiles,) int32 scale id per row tile (consumed only by
    #          the weight/bias index_maps; unused in the body).
    # x_ref:   (TM, K)  bf16 raw patch pixels (normalization folded into w/b)
    # w_ref:   (K, Np)  bf16 normalization-folded weight for this tile's scale
    # b_ref:   (1, Np)  f32  folded bias
    # o_ref:   (TM, Np) f32
    del sid_ref
    acc = jnp.dot(x_ref[...], w_ref[...], preferred_element_type=jnp.float32)
    o_ref[...] = acc + b_ref[...]


def fused_patch_embed(patches, scale_ids, weights, biases, *, tm):
    """patches: (Mp, K) bf16 (Mp multiple of tm); scale_ids: (Mp//tm,) int32;
    weights: (S, K, Np) bf16; biases: (S, 1, Np) f32. Returns (Mp, Np) f32."""
    Mp, K = patches.shape
    S, _, Np = weights.shape
    assert Mp % tm == 0 and Np % 128 == 0
    num_tiles = Mp // tm

    x_isz = patches.dtype.itemsize
    w_isz = weights.dtype.itemsize
    cost = pl.CostEstimate(
        flops=2 * Mp * K * Np,
        transcendentals=0,
        bytes_accessed=(patches.size * x_isz + weights.size * w_isz
                        + biases.size * 4 + Mp * Np * 4),
    )

    # Double-buffered steady-state VMEM footprint (+2x margin, clamped so it
    # never asks for more than is sensible on any generation).
    vmem_need = (2 * tm * K * x_isz        # patch tiles (bf16)
                 + 2 * tm * Np * 4         # output tiles (f32)
                 + 2 * K * Np * w_isz      # weight slabs (bf16)
                 + 2 * Np * 4)             # bias
    vmem_limit = int(min(max(2 * vmem_need, 32 * 1024 * 1024),
                         100 * 1024 * 1024))

    return pl.pallas_call(
        _fused_embed_kernel,
        out_shape=jax.ShapeDtypeStruct((Mp, Np), jnp.float32),
        grid_spec=pltpu.PrefetchScalarGridSpec(
            num_scalar_prefetch=1,
            grid=(num_tiles,),
            in_specs=[
                # patch row tile
                pl.BlockSpec((tm, K), lambda i, sid: (i, 0)),
                # per-scale folded weight slab, selected via scalar prefetch
                pl.BlockSpec((None, K, Np), lambda i, sid: (sid[i], 0, 0)),
                # per-scale folded bias
                pl.BlockSpec((None, 1, Np), lambda i, sid: (sid[i], 0, 0)),
            ],
            out_specs=pl.BlockSpec((tm, Np), lambda i, sid: (i, 0)),
        ),
        compiler_params=pltpu.CompilerParams(
            dimension_semantics=("parallel",),
            vmem_limit_bytes=vmem_limit),
        cost_estimate=cost,
    )(scale_ids, patches, weights, biases)


# ----------------------------------------------------------------------------
# Glue: resize, patch extraction, parameter preparation
# ----------------------------------------------------------------------------
IMAGENET_MEAN = jnp.array([0.485, 0.456, 0.406], dtype=jnp.float32)
IMAGENET_STD = jnp.array([0.229, 0.224, 0.225], dtype=jnp.float32)


def _round_up(v, m):
    return ((v + m - 1) // m) * m


def _extract_patches(x, patch_size):
    """x: (B, C, S, S) -> (B*nP, C*p*p), patch-vector order (C, ph, pw)."""
    B, C, S, _ = x.shape
    p = patch_size
    g = S // p
    x = x.reshape(B, C, g, p, g, p)
    x = jnp.transpose(x, (0, 2, 4, 1, 3, 5))        # (B, gh, gw, C, ph, pw)
    return x.reshape(B * g * g, C * p * p)


class MultiScalePatchEmbed:
    """JAX/Pallas port of the PyTorch MultiScalePatchEmbed."""

    def __init__(self, img_sizes, patch_size, in_chans, embed_dim, key,
                 tm=256):
        assert tm % 16 == 0
        self.img_sizes = list(img_sizes)
        self.patch_size = patch_size
        self.in_chans = in_chans
        self.embed_dim = embed_dim
        self.tm = tm
        self.num_patches = [(s // patch_size) ** 2 for s in img_sizes]

        K = in_chans * patch_size * patch_size
        Np = _round_up(embed_dim, 128)          # lane-dense output columns
        self.K = K
        self.embed_dim_padded = Np

        # Per-column normalization vectors, broadcast channel stats over p*p.
        pp = patch_size * patch_size
        inv_std = jnp.repeat((1.0 / IMAGENET_STD)[:in_chans], pp)        # (K,)
        shift = jnp.repeat(
            (-IMAGENET_MEAN / IMAGENET_STD)[:in_chans], pp)              # (K,)

        # Deterministic Conv2d-style params per scale (kaiming-uniform-ish).
        bound = 1.0 / float(np.sqrt(K))
        folded_w, folded_b = [], []
        self.ref_weights, self.ref_biases = [], []
        for i, _ in enumerate(img_sizes):
            kw, kb = jax.random.split(jax.random.fold_in(key, i))
            w = jax.random.uniform(
                kw, (embed_dim, in_chans, patch_size, patch_size),
                minval=-bound, maxval=bound, dtype=jnp.float32)
            b = jax.random.uniform(
                kb, (embed_dim,), minval=-bound, maxval=bound,
                dtype=jnp.float32)
            w2 = w.reshape(embed_dim, K).T                  # (K, E), (C,ph,pw)
            self.ref_weights.append(w2)
            self.ref_biases.append(b)

            # Fold normalization into the projection: x@(scale*W) + (shift@W+b)
            wf = w2 * inv_std[:, None]                      # (K, E)
            bf = b + shift @ w2                             # (E,)
            # Pad embedding columns to a multiple of 128 (lane-dense stores).
            wf = jnp.pad(wf, ((0, 0), (0, Np - embed_dim)))
            bf = jnp.pad(bf, (0, Np - embed_dim))
            folded_w.append(wf)
            folded_b.append(bf.reshape(1, Np))

        # bf16 weights (half the DMA, MXU-native); bias stays f32.
        self.weights_folded = jnp.stack(folded_w, axis=0).astype(jnp.bfloat16)
        self.biases_folded = jnp.stack(folded_b, axis=0)     # (S, 1, Np) f32

        self._forward = jax.jit(self._forward_impl)

    # ------------------------------------------------------------------ #
    def _forward_impl(self, x, weights, biases):
        B = x.shape[0]
        Ms = [B * n for n in self.num_patches]
        # Adapt the row tile to the smallest per-scale row count so tiny
        # batch / scale configs don't pad >90% of the tile with zeros.
        # 16-row alignment keeps the bf16 sublane tiling legal.
        tm = max(16, min(self.tm, _round_up(min(Ms), 16)))

        offs, scale_ids, off = [], [], 0
        for sidx, M in enumerate(Ms):
            Mp = _round_up(M, tm)
            offs.append(off)
            scale_ids += [sidx] * (Mp // tm)
            off += Mp
        Mtot = off
        # Keep row bookkeeping and scale_ids consistent with the layout.
        assert Mtot % tm == 0 and len(scale_ids) == Mtot // tm
        sid = jnp.asarray(np.asarray(scale_ids, dtype=np.int32))

        # Single preallocated (Mtot, K) patch buffer; per-scale im2col blocks
        # are written in place (no per-scale jnp.pad + jnp.concatenate).
        patches = jnp.zeros((Mtot, self.K), dtype=jnp.bfloat16)
        for sidx, s in enumerate(self.img_sizes):
            rx = jax.image.resize(
                x, (B, self.in_chans, s, s), method="bilinear")
            p = _extract_patches(rx, self.patch_size).astype(jnp.bfloat16)
            patches = lax.dynamic_update_slice(patches, p, (offs[sidx], 0))

        out = fused_patch_embed(patches, sid, weights, biases, tm=tm)

        outs = []
        for sidx, s in enumerate(self.img_sizes):
            g = s // self.patch_size
            M = Ms[sidx]
            # Slice + reshape in one expression so XLA fuses the copy.
            o = out[offs[sidx]:offs[sidx] + M, :self.embed_dim]
            outs.append(o.reshape(B, g * g, self.embed_dim))
        return outs

    def __call__(self, x):
        """x: (B, C, H, W) f32 -> list of (B, num_patches, embed_dim)."""
        return self._forward(x, self.weights_folded, self.biases_folded)


# ----------------------------------------------------------------------------
# Reference (pure JAX, f32) for sanity checking
# ----------------------------------------------------------------------------
def _reference_forward(module, x):
    B = x.shape[0]
    mean = IMAGENET_MEAN[: module.in_chans].reshape(1, -1, 1, 1)
    std = IMAGENET_STD[: module.in_chans].reshape(1, -1, 1, 1)
    outs = []
    for s, w, b in zip(module.img_sizes, module.ref_weights,
                       module.ref_biases):
        rx = jax.image.resize(x, (B, module.in_chans, s, s), method="bilinear")
        rx = (rx - mean) / std
        patches = _extract_patches(rx, module.patch_size)
        out = patches @ w + b[None, :]
        g = s // module.patch_size
        outs.append(out.reshape(B, g * g, module.embed_dim))
    return outs


if __name__ == "__main__":
    key = jax.random.PRNGKey(0)
    k_x, k_params = jax.random.split(key)

    # Small shapes: batch=2, in_chans=3, 16x16 input, scales [16, 32],
    # patch_size=8, embed_dim=32.
    B, C, H, W = 2, 3, 16, 16
    x = jax.random.uniform(k_x, (B, C, H, W), dtype=jnp.float32)

    module = MultiScalePatchEmbed(
        img_sizes=[16, 32], patch_size=8, in_chans=C, embed_dim=32,
        key=k_params, tm=128)

    outs = module(x)
    outs = [jax.block_until_ready(o) for o in outs]

    refs = _reference_forward(module, x)
    for o, r in zip(outs, refs):
        assert o.shape == r.shape, (o.shape, r.shape)
        err = float(jnp.max(jnp.abs(o - r)))
        # bf16 operands (f32 accumulation) -> relaxed tolerance vs f32 ref.
        assert jnp.allclose(o, r, atol=5e-2, rtol=5e-2), err

    print("KERNEL_OK")
</pallas_src>

<mosaic_0001>
module attributes {stable_mosaic.version = 11 : i64} {
  func.func @_fused_embed_kernel(%arg0: i32, %arg1: memref<3xi32, #tpu.memory_space<smem>>, %arg2: memref<16x192xbf16, #tpu.memory_space<vmem>>, %arg3: memref<1x192x128xbf16, #tpu.memory_space<vmem>>, %arg4: memref<1x1x128xf32, #tpu.memory_space<vmem>>, %arg5: memref<16x128xf32, #tpu.memory_space<vmem>>) attributes {dimension_semantics = [#tpu.dimension_semantics<parallel>], iteration_bounds = array<i64: 3>, scalar_prefetch = 1 : i64, scratch_operands = 0 : i64, tpu.core_type = #tpu.core_type<tc>, window_params = [{transform_indices = @transform_0, window_bounds = array<i64: 16, 192>}, {transform_indices = @transform_1, window_bounds = array<i64: 1, 192, 128>}, {transform_indices = @transform_2, window_bounds = array<i64: 1, 1, 128>}, {transform_indices = @transform_3, window_bounds = array<i64: 16, 128>}]} {
    %c0 = arith.constant 0 : index
    %c0_0 = arith.constant 0 : index
    %0 = vector.load %arg2[%c0, %c0_0] : memref<16x192xbf16, #tpu.memory_space<vmem>>, vector<16x192xbf16>
    %c0_1 = arith.constant 0 : index
    %c0_2 = arith.constant 0 : index
    %c0_3 = arith.constant 0 : index
    %1 = vector.load %arg3[%c0_1, %c0_2, %c0_3] : memref<1x192x128xbf16, #tpu.memory_space<vmem>>, vector<1x192x128xbf16>
    %2 = vector.shape_cast %1 : vector<1x192x128xbf16> to vector<192x128xbf16>
    %cst = arith.constant dense<0.000000e+00> : vector<16x128xf32>
    %3 = tpu.matmul %0, %2, %cst {dimension_numbers = #tpu.dot_dimension_numbers<[1], [0], [0], [1], [0, 0, 1, 1], [], []>} : vector<16x192xbf16>, vector<192x128xbf16>, vector<16x128xf32> -> vector<16x128xf32>
    %c0_4 = arith.constant 0 : index
    %c0_5 = arith.constant 0 : index
    %c0_6 = arith.constant 0 : index
    %4 = vector.load %arg4[%c0_4, %c0_5, %c0_6] : memref<1x1x128xf32, #tpu.memory_space<vmem>>, vector<1x1x128xf32>
    %5 = vector.shape_cast %4 : vector<1x1x128xf32> to vector<1x128xf32>
    %6 = vector.broadcast %5 : vector<1x128xf32> to vector<16x128xf32>
    %7 = arith.addf %3, %6 : vector<16x128xf32>
    %c0_7 = arith.constant 0 : index
    %c0_8 = arith.constant 0 : index
    %8 = vector.load %arg5[%c0_7, %c0_8] : memref<16x128xf32, #tpu.memory_space<vmem>>, vector<16x128xf32>
    tpu.vector_store %arg5[%c0_7, %c0_8], %7 {strides = array<i32>} : memref<16x128xf32, #tpu.memory_space<vmem>>, vector<16x128xf32>,
    return
  }
  func.func @transform_0(%arg0: i32, %arg1: memref<3xi32, #tpu.memory_space<smem>>) -> (i32, i32) {
    %c0_i32 = arith.constant 0 : i32
    %c0_i32_0 = arith.constant 0 : i32
    return %arg0, %c0_i32 : i32, i32
  }
  func.func @transform_1(%arg0: i32, %arg1: memref<3xi32, #tpu.memory_space<smem>>) -> (i32, i32, i32) {
    %0 = arith.index_cast %arg0 : i32 to index
    %1 = memref.load %arg1[%0] : memref<3xi32, #tpu.memory_space<smem>>
    %c0_i32 = arith.constant 0 : i32
    %c0_i32_0 = arith.constant 0 : i32
    %c0_i32_1 = arith.constant 0 : i32
    return %1, %c0_i32, %c0_i32_0 : i32, i32, i32
  }
  func.func @transform_2(%arg0: i32, %arg1: memref<3xi32, #tpu.memory_space<smem>>) -> (i32, i32, i32) {
    %0 = arith.index_cast %arg0 : i32 to index
    %1 = memref.load %arg1[%0] : memref<3xi32, #tpu.memory_space<smem>>
    %c0_i32 = arith.constant 0 : i32
    %c0_i32_0 = arith.constant 0 : i32
    %c0_i32_1 = arith.constant 0 : i32
    return %1, %c0_i32, %c0_i32_0 : i32, i32, i32
  }
  func.func @transform_3(%arg0: i32, %arg1: memref<3xi32, #tpu.memory_space<smem>>) -> (i32, i32) {
    %c0_i32 = arith.constant 0 : i32
    %c0_i32_0 = arith.constant 0 : i32
    return %arg0, %c0_i32 : i32, i32
  }
}

</mosaic_0001>

<llo_original>
// kernel: _forward_impl.1
$region0: #{_forward_impl.1}
  #allocation0 [shape = 'u32[]', space=smem, size = 0x4, offset = 0x4, fixed_abs, tag = 'smem constant byte address 0x4 - core index']
  #allocation1 [shape = 'u32[144,128]{1,0:T(1,128)}', space=vmem, size = 0x12000, scoped, tag = 'internal scratch']
  #allocation2 [shape = 's32[1]{0}', space=sflag, size = 0x4, scoped, tag = 'scoped memory for _forward_impl.1']
  #allocation3 [shape = 'u8[512]{0}', space=smem, size = 0x200, scoped, tag = 'prefetched SMEM operand 0']
  %s0 = inlined_call_operand.vmem [shape: s32[3], index: 0, kind: input, shape index: {}]
  %s1 = inlined_call_operand.vmem [shape: bf16[48,192], index: 1, kind: input, shape index: {}]
  %s2 = inlined_call_operand.vmem [shape: bf16[2,192,128], index: 2, kind: input, shape index: {}]
  %s3 = inlined_call_operand.vmem [shape: f32[2,1,128], index: 3, kind: input, shape index: {}]
  %s4 = inlined_call_operand.vmem [shape: f32[48,128], index: 4, kind: output, shape index: {}]
  %s5 = sld [smem:[#allocation0]]
  $region45: #{_forward_impl.1} parent=0
    _
  %s7 = ssub.s32 1, %s5
  %s8 = scalar_select 0, %s7, %s5
  %s9 = sshll.u32 %s0, 4
  %s10 = int_to_ptr.vmem [resolvable:$true] %s9
  %12 = dma.vmem_to_smem %s10, 16, [#allocation3], [#allocation2]
  %13 = dma.done [#allocation2], 16
  %14 = sfence
  loop: start=0, step=1, limit=5
  $region2: #{_forward_impl.1} parent=0 // loop_pre_header
    _
  $region3: #{_forward_impl.1} parent=0 // loop_header
    %s16 = sphi 0, %s20
    %p17 = scmp.ge.s32.totalorder %s16, 5
    %s26 = sphi 0, %s28
    %s29 = sphi 0, %s26
    %s30 = sphi 0, %s29
    %s46 = sphi 0, %s30
    %s54 = sphi 0, %s56
    %s57 = sphi 0, %s54
    %s58 = sphi 0, %s57
    %s74 = sphi 0, %s58
    %s82 = sphi 0, %s84
    %s85 = sphi 0, %s82
    %s86 = sphi 0, %s85
    %s102 = sphi 0, %s86
    %s108 = sphi 0, %s110
    %s111 = sphi 0, %s108
    %s112 = sphi 0, %s111
    %s128 = sphi 0, %s112
  $region4: #{_forward_impl.1} parent=0 // loop_header_branch
    %19 = sbr.rel (%p17) target = $region8
  $region5: #{_forward_impl.1} parent=0 // loop_body
    %s21 = ssub.s32 %s16, 1
    %s22 = ssub.s32 %s16, 2
    %s23 = sadd.s32 %s16, 1
    %s24 = ssub.s32 %s16, %s23
    %p25 = scmp.eq.s32.totalorder %s24, 0
    %s27 = sadd.s32 %s26, 1
    %s28 = scalar_select %p25, %s26, %s27
    %p31 = pneg %p25
    %p32 = scmp.eq.s32.totalorder %s16, 2
    %p33 = por %p31, %p32
    %p34 = scmp.ne.s32.totalorder %s26, %s29
    %p35 = scmp.eq.s32.totalorder %s16, 0
    %p36 = por %p34, %p35
    %p37 = scmp.ne.s32.totalorder %s26, %s29
    %p38 = scmp.eq.s32.totalorder %s21, 2
    %p39 = por %p37, %p38
    %p40 = scmp.ne.s32.totalorder %s29, %s30
    %p41 = scmp.eq.s32.totalorder %s21, 0
    %p42 = por %p40, %p41
    %p43 = scmp.ne.s32.totalorder %s29, %s30
    %p44 = scmp.eq.s32.totalorder %s22, 2
    %p45 = por %p43, %p44
    %p47 = scmp.ne.s32.totalorder %s30, %s46
    %p48 = scmp.eq.s32.totalorder %s22, 0
    %p49 = por %p47, %p48
    %s50 = sld [smem:[#allocation3 + %s16]]
    %s51 = sld [smem:[#allocation3 + %s23]]
    %s52 = ssub.s32 %s50, %s51
    %p53 = scmp.eq.s32.totalorder %s52, 0
    %s55 = sadd.s32 %s54, 1
    %s56 = scalar_select %p53, %s54, %s55
    %p59 = pneg %p53
    %p60 = scmp.eq.s32.totalorder %s16, 2
    %p61 = por %p59, %p60
    %p62 = scmp.ne.s32.totalorder %s54, %s57
    %p63 = scmp.eq.s32.totalorder %s16, 0
    %p64 = por %p62, %p63
    %p65 = scmp.ne.s32.totalorder %s54, %s57
    %p66 = scmp.eq.s32.totalorder %s21, 2
    %p67 = por %p65, %p66
    %p68 = scmp.ne.s32.totalorder %s57, %s58
    %p69 = scmp.eq.s32.totalorder %s21, 0
    %p70 = por %p68, %p69
    %p71 = scmp.ne.s32.totalorder %s57, %s58
    %p72 = scmp.eq.s32.totalorder %s22, 2
    %p73 = por %p71, %p72
    %p75 = scmp.ne.s32.totalorder %s58, %s74
    %p76 = scmp.eq.s32.totalorder %s22, 0
    %p77 = por %p75, %p76
    %s78 = sld [smem:[#allocation3 + %s16]]
    %s79 = sld [smem:[#allocation3 + %s23]]
    %s80 = ssub.s32 %s78, %s79
    %p81 = scmp.eq.s32.totalorder %s80, 0
    %s83 = sadd.s32 %s82, 1
    %s84 = scalar_select %p81, %s82, %s83
    %p87 = pneg %p81
    %p88 = scmp.eq.s32.totalorder %s16, 2
    %p89 = por %p87, %p88
    %p90 = scmp.ne.s32.totalorder %s82, %s85
    %p91 = scmp.eq.s32.totalorder %s16, 0
    %p92 = por %p90, %p91
    %p93 = scmp.ne.s32.totalorder %s82, %s85
    %p94 = scmp.eq.s32.totalorder %s21, 2
    %p95 = por %p93, %p94
    %p96 = scmp.ne.s32.totalorder %s85, %s86
    %p97 = scmp.eq.s32.totalorder %s21, 0
    %p98 = por %p96, %p97
    %p99 = scmp.ne.s32.totalorder %s85, %s86
    %p100 = scmp.eq.s32.totalorder %s22, 2
    %p101 = por %p99, %p100
    %p103 = scmp.ne.s32.totalorder %s86, %s102
    %p104 = scmp.eq.s32.totalorder %s22, 0
    %p105 = por %p103, %p104
    %s106 = ssub.s32 %s16, %s23
    %p107 = scmp.eq.s32.totalorder %s106, 0
    %s109 = sadd.s32 %s108, 1
    %s110 = scalar_select %p107, %s108, %s109
    %p113 = pneg %p107
    %p114 = scmp.eq.s32.totalorder %s16, 2
    %p115 = por %p113, %p114
    %p116 = scmp.ne.s32.totalorder %s108, %s111
    %p117 = scmp.eq.s32.totalorder %s16, 0
    %p118 = por %p116, %p117
    %p119 = scmp.ne.s32.totalorder %s108, %s111
    %p120 = scmp.eq.s32.totalorder %s21, 2
    %p121 = por %p119, %p120
    %p122 = scmp.ne.s32.totalorder %s111, %s112
    %p123 = scmp.eq.s32.totalorder %s21, 0
    %p124 = por %p122, %p123
    %p125 = scmp.ne.s32.totalorder %s111, %s112
    %p126 = scmp.eq.s32.totalorder %s22, 2
    %p127 = por %p125, %p126
    %p129 = scmp.ne.s32.totalorder %s112, %s128
    %p130 = scmp.eq.s32.totalorder %s22, 0
    %p131 = por %p129, %p130
    %p132 = scmp.le.s32.totalorder 1, %s16
    %p133 = scmp.lt.s32.totalorder %s16, 4
    %p134 = pnand %p132, %p133
    %p135 = pneg %p134
    // Predicated region
    $region9: #{_forward_impl.1} parent=5 // pred_check
      _
    $region10: #{_forward_impl.1} parent=5 // pred_check_branch
      %137 = sbr.rel (%p134) target = $region12
    $region11: #{_forward_impl.1} parent=5 // pred_region
      %s138 = ssub.s32 %s16, 1
    $region12: #{_forward_impl.1} parent=5 // pred_fallthru
      _
    %p139 = scmp.lt.s32.totalorder %s16, 3
    // Predicated region
    $region13: #{_forward_impl.1} parent=5 // pred_check
      %p140 = pneg %p139
    $region14: #{_forward_impl.1} parent=5 // pred_check_branch
      %142 = sbr.rel (%p140) target = $region16
    $region15: #{_forward_impl.1} parent=5 // pred_region
      // Predicated region
      $region17: #{_forward_impl.1} parent=15 // pred_check
        %p143 = pneg %p36
      $region18: #{_forward_impl.1} parent=15 // pred_check_branch
        %145 = sbr.rel (%p143) target = $region20
      $region19: #{_forward_impl.1} parent=15 // pred_region
        %s146 = smul.u32 2, %s16
        %p147 = scmp.lt.s32.totalorder %s146, 5
        %s148 = scalar_select %p147, %s146, 5
        %s149 = smul.addr %s148, 2
        %s150 = smul.addr %s149, 4
        %s151 = scalar_lea.vmem %s1, %s150
        %s152 = smul.u32 2, %s16
      $region20: #{_forward_impl.1} parent=15 // pred_fallthru
        _
      // Predicated region
      $region21: #{_forward_impl.1} parent=15 // pred_check
        %p153 = pneg %p64
      $region22: #{_forward_impl.1} parent=15 // pred_check_branch
        %155 = sbr.rel (%p153) target = $region24
      $region23: #{_forward_impl.1} parent=15 // pred_region
        %s156 = sld [smem:[#allocation3 + %s16]]
        %p157 = scmp.lt.s32.totalorder %s156, 1
        %s158 = scalar_select %p157, %s156, 1
        %s159 = smul.addr %s158, 24
        %s160 = smul.addr %s159, 4
        %s161 = scalar_lea.vmem %s2, %s160
        %s162 = sld [smem:[#allocation3 + %s16]]
      $region24: #{_forward_impl.1} parent=15 // pred_fallthru
        _
      // Predicated region
      $region25: #{_forward_impl.1} parent=15 // pred_check
        %p163 = pneg %p92
      $region26: #{_forward_impl.1} parent=15 // pred_check_branch
        %165 = sbr.rel (%p163) target = $region28
      $region27: #{_forward_impl.1} parent=15 // pred_region
        %s166 = sld [smem:[#allocation3 + %s16]]
        %p167 = scmp.lt.s32.totalorder %s166, 1
        %s168 = scalar_select %p167, %s166, 1
        %s169 = scalar_lea.vmem %s3, %s168
        %s170 = sld [smem:[#allocation3 + %s16]]
      $region28: #{_forward_impl.1} parent=15 // pred_fallthru
        _
    $region16: #{_forward_impl.1} parent=5 // pred_fallthru
      _
    %p171 = scmp.le.s32.totalorder 1, %s16
    %p172 = scmp.lt.s32.totalorder %s16, 4
    %p173 = pnand %p171, %p172
    %p174 = pneg %p173
    // Predicated region
    $region29: #{_forward_impl.1} parent=5 // pred_check
      _
    $region30: #{_forward_impl.1} parent=5 // pred_check_branch
      %176 = sbr.rel (%p173) target = $region32
    $region31: #{_forward_impl.1} parent=5 // pred_region
      %s177 = ssub.s32 %s16, 1
      %s178 = smul.u32 2, %s21
      %p179 = scmp.lt.s32.totalorder %s178, 5
      %s180 = scalar_select %p179, %s178, 5
      %s181 = smul.addr %s180, 2
      %s182 = smul.addr %s181, 4
      %s183 = scalar_lea.vmem %s1, %s182
      %p184 = pneg %p42
      %p185 = pneg %p39
      %s186 = sld [smem:[#allocation3 + %s21]]
      %p187 = scmp.lt.s32.totalorder %s186, 1
      %s188 = scalar_select %p187, %s186, 1
      %s189 = smul.addr %s188, 24
      %s190 = smul.addr %s189, 4
      %s191 = scalar_lea.vmem %s2, %s190
      %p192 = pneg %p70
      %p193 = pneg %p67
      %s194 = sld [smem:[#allocation3 + %s21]]
      %p195 = scmp.lt.s32.totalorder %s194, 1
      %s196 = scalar_select %p195, %s194, 1
      %s197 = scalar_lea.vmem %s3, %s196
      %p198 = pneg %p98
      %p199 = pneg %p95
      %p200 = pneg %p124
      %p201 = pneg %p121
      %s202 = smul.u32 2, %s21
      %p203 = scmp.lt.s32.totalorder %s202, 5
      %s204 = scalar_select %p203, %s202, 5
      %s205 = smul.addr %s204, 8
      %s206 = scalar_lea.vmem %s4, %s205
      %s207 = smul.u32 2, %s21
      %p208 = scmp.lt.s32.totalorder %s207, 5
      %s209 = scalar_select %p208, %s207, 5
      %s210 = smul.addr %s209, 2
      %s211 = smul.addr %s210, 4
      %s212 = scalar_lea.vmem %s1, %s211
      %s213 = smul.u32 2, %s21
      %s214 = sld [smem:[#allocation3 + %s21]]
      %p215 = scmp.lt.s32.totalorder %s214, 1
      %s216 = scalar_select %p215, %s214, 1
      %s217 = smul.addr %s216, 24
      %s218 = smul.addr %s217, 4
      %s219 = scalar_lea.vmem %s2, %s218
      %s220 = sld [smem:[#allocation3 + %s21]]
      %s221 = sld [smem:[#allocation3 + %s21]]
      %p222 = scmp.lt.s32.totalorder %s221, 1
      %s223 = scalar_select %p222, %s221, 1
      %s224 = scalar_lea.vmem %s3, %s223
      %s225 = sld [smem:[#allocation3 + %s21]]
      %s226 = smul.u32 2, %s21
      %p227 = scmp.lt.s32.totalorder %s226, 5
      %s228 = scalar_select %p227, %s226, 5
      %s229 = smul.addr %s228, 8
      %s230 = scalar_lea.vmem %s4, %s229
      %s231 = smul.u32 2, %s21
      %v233 = vld [vmem:[%s212] sm:$0xff]
      %v234 = vld [vmem:[%s212 + $0x8] sm:$0xff]
      %v235 = vld [vmem:[%s219] sm:$0xf]
      %v236 = vld [vmem:[%s219 + $0x4] sm:$0xf]
      %v237 = vld [vmem:[%s219 + $0x8] sm:$0xf]
      %v238 = vld [vmem:[%s219 + $0xc] sm:$0xf]
      %v239 = vld [vmem:[%s219 + $0x10] sm:$0xf]
      %v240 = vld [vmem:[%s219 + $0x14] sm:$0xf]
      %v241 = vld [vmem:[%s219 + $0x18] sm:$0xf]
      %v242 = vld [vmem:[%s219 + $0x1c] sm:$0xf]
      %v243 = vld [vmem:[%s219 + $0x20] sm:$0xf]
      %v244 = vld [vmem:[%s219 + $0x24] sm:$0xf]
      %v245 = vld [vmem:[%s219 + $0x28] sm:$0xf]
      %v246 = vld [vmem:[%s219 + $0x2c] sm:$0xf]
      %v247 = vld [vmem:[%s219 + $0x30] sm:$0xf]
      %v248 = vld [vmem:[%s219 + $0x34] sm:$0xf]
      %v249 = vld [vmem:[%s219 + $0x38] sm:$0xf]
      %v250 = vld [vmem:[%s219 + $0x3c] sm:$0xf]
      %v251 = vld [vmem:[%s219 + $0x40] sm:$0xf]
      %v252 = vld [vmem:[%s219 + $0x44] sm:$0xf]
      %v253 = vld [vmem:[%s219 + $0x48] sm:$0xf]
      %v254 = vld [vmem:[%s219 + $0x4c] sm:$0xf]
      %v255 = vld [vmem:[%s219 + $0x50] sm:$0xf]
      %v256 = vld [vmem:[%s219 + $0x54] sm:$0xf]
      %v257 = vld [vmem:[%s219 + $0x58] sm:$0xf]
      %v258 = vld [vmem:[%s219 + $0x5c] sm:$0xf]
      %v259 = vld [vmem:[%s224] sm:$0x1]
      %v261 = vlaneseq
      %v262 = vshrl.u32 %v261, 7
      %v263 = vsub.s32 0, %v262
      %v264 = vrot.slane %v259, %v263
      %v268 = vunpack.c.l.b16 %v233
      %v269 = vunpack.c.h.b16 %v233
      %v270 = vunpack.c.l.b16 %v234
      %v271 = vunpack.c.h.b16 %v234
      %v272 = vpack.c.b16 %v270, %v268
      %v273 = vpack.c.b16 %v271, %v269
      %v299 = vunpack.c.l.b16 %v235
      %v300 = vunpack.c.l.b16 %v236
      %v301 = vunpack.c.l.b16 %v237
      %v302 = vunpack.c.l.b16 %v238
      %v303 = vunpack.c.l.b16 %v239
      %v304 = vunpack.c.l.b16 %v240
      %v305 = vunpack.c.l.b16 %v241
      %v306 = vunpack.c.l.b16 %v242
      %v307 = vunpack.c.l.b16 %v243
      %v308 = vunpack.c.l.b16 %v244
      %v309 = vunpack.c.l.b16 %v245
      %v310 = vunpack.c.l.b16 %v246
      %v311 = vunpack.c.l.b16 %v247
      %v312 = vunpack.c.l.b16 %v248
      %v313 = vunpack.c.l.b16 %v249
      %v314 = vunpack.c.l.b16 %v250
      %v315 = vunpack.c.l.b16 %v251
      %v316 = vunpack.c.l.b16 %v252
      %v317 = vunpack.c.l.b16 %v253
      %v318 = vunpack.c.l.b16 %v254
      %v319 = vunpack.c.l.b16 %v255
      %v320 = vunpack.c.l.b16 %v256
      %v321 = vunpack.c.l.b16 %v257
      %v322 = vunpack.c.l.b16 %v258
      %v323 = vpack.c.b16 %v300, %v299
      %v324 = vpack.c.b16 %v302, %v301
      %v325 = vpack.c.b16 %v304, %v303
      %v326 = vpack.c.b16 %v306, %v305
      %v327 = vpack.c.b16 %v308, %v307
      %v328 = vpack.c.b16 %v310, %v309
      %v329 = vpack.c.b16 %v312, %v311
      %v330 = vpack.c.b16 %v314, %v313
      %v331 = vpack.c.b16 %v316, %v315
      %v332 = vpack.c.b16 %v318, %v317
      %v333 = vpack.c.b16 %v320, %v319
      %v334 = vpack.c.b16 %v322, %v321
      %vm347 = vcmask 523264
      %v349 = vsel %vm347, %v273, 0
      %351 = vmatprep.subr.bf16.mxu0 0
      %352 = vmatpush1.bf16.msra.mxu0 %v323
      %353 = vmatprep.subr.bf16.mxu0 0
      %354 = vmatpush1.bf16.msra.mxu0 %v324
      %355 = vmatprep.subr.bf16.mxu0 0
      %356 = vmatpush1.bf16.msra.mxu0 %v325
      %357 = vmatprep.subr.bf16.mxu0 0
      %358 = vmatpush1.bf16.msra.mxu0 %v326
      %359 = vmatprep.subr.bf16.mxu0 0
      %360 = vmatpush1.bf16.msra.mxu0 %v327
      %361 = vmatprep.subr.bf16.mxu0 0
      %362 = vmatpush1.bf16.msra.mxu0 %v328
      %363 = vmatprep.subr.bf16.mxu0 0
      %364 = vmatpush1.bf16.msra.mxu0 %v329
      %365 = vmatprep.subr.bf16.mxu0 0
      %366 = vmatpush1.bf16.msra.mxu0 %v330
      %367 = vmatprep.subr.bf16.mxu0 0
      %368 = vmatpush1.bf16.msra.mxu0 %v331
      %369 = vmatprep.subr.bf16.mxu0 0
      %370 = vmatpush1.bf16.msra.mxu0 %v332
      %371 = vmatprep.subr.bf16.mxu0 0
      %372 = vmatpush1.bf16.msra.mxu0 %v333
      %373 = vmatprep.subr.bf16.mxu0 0
      %374 = vmatpush1.bf16.msra.mxu0 %v334
      %375 = vmatprep.subr.bf16.mxu0 0
      %376 = vmatpush1.bf16.msra.mxu0 0
      %377 = vmatprep.subr.bf16.mxu0 0
      %378 = vmatpush1.bf16.msra.mxu0 0
      %379 = vmatprep.subr.bf16.mxu0 0
      %380 = vmatpush1.bf16.msra.mxu0 0
      %381 = vmatprep.subr.bf16.mxu0 0
      %382 = vmatpush1.bf16.msra.mxu0 0
      %383 = vmatprep.mubr.bf16.mxu0 %v349
      %384 = vmatmul.mubr.bf16.gmra.mrb[0].mxu0 %v272
      %v385 = vpop.f32.mrb[0].mxu0
      %v386 = vadd.f32 %v264, %v385
      %v387 = vpop.f32.mrb[0].mxu0
      %v388 = vpop.f32.mrb[0].mxu0
      %v389 = vadd.f32 %v264, %v388
      %v390 = vpop.f32.mrb[0].mxu0
      %391 = vdwg.mxu0
      %392 = vst [vmem:[%s230] sm:$0xff] %v386
      %393 = vst [vmem:[%s230 + $0x8] sm:$0xff] %v389
      %s394 = smul.u32 2, %s21
      %p395 = scmp.lt.s32.totalorder %s394, 5
      %s396 = scalar_select %p395, %s394, 5
      %s397 = smul.addr %s396, 8
      %s398 = scalar_lea.vmem %s4, %s397
      // Predicated region
      $region33: #{_forward_impl.1} parent=31 // pred_check
        %p399 = pneg %p121
      $region34: #{_forward_impl.1} parent=31 // pred_check_branch
        %401 = sbr.rel (%p399) target = $region36
      $region35: #{_forward_impl.1} parent=31 // pred_region
        %s402 = smul.u32 2, %s21
      $region36: #{_forward_impl.1} parent=31 // pred_fallthru
        _
    $region32: #{_forward_impl.1} parent=5 // pred_fallthru
      _
    %p403 = scmp.le.s32.totalorder 2, %s16
    // Predicated region
    $region37: #{_forward_impl.1} parent=5 // pred_check
      %p404 = pneg %p403
    $region38: #{_forward_impl.1} parent=5 // pred_check_branch
      %406 = sbr.rel (%p404) target = $region40
    $region39: #{_forward_impl.1} parent=5 // pred_region
      %s407 = ssub.s32 %s16, 2
      // Predicated region
      $region41: #{_forward_impl.1} parent=39 // pred_check
        %p408 = pneg %p127
      $region42: #{_forward_impl.1} parent=39 // pred_check_branch
        %410 = sbr.rel (%p408) target = $region44
      $region43: #{_forward_impl.1} parent=39 // pred_region
        %s411 = smul.u32 2, %s22
        %p412 = scmp.lt.s32.totalorder %s411, 5
        %s413 = scalar_select %p412, %s411, 5
        %s414 = smul.addr %s413, 8
        %s415 = scalar_lea.vmem %s4, %s414
      $region44: #{_forward_impl.1} parent=39 // pred_fallthru
        _
    $region40: #{_forward_impl.1} parent=5 // pred_fallthru
      _
  $region6: #{_forward_impl.1} parent=0 // loop_footer
    %s20 = sadd.s32 1, %s16
  $region7: #{_forward_impl.1} parent=0 // loop_footer_branch
    %15 = sbr.rel target = $region3
  $region8: #{_forward_impl.1} parent=0 // loop_exit
    _

</llo_original>
